<compile_context>
chip_gen: v6e
topology: v6e:2x2x1
jax: 0.10.0
libtpu: 0.0.40
codegen_flags: <defaults>
</compile_context>

<pallas_src>
import jax
import jax.numpy as jnp
from jax.experimental import pallas as pl
from jax.experimental.pallas import tpu as pltpu


def _round_up(x, m):
    return ((x + m - 1) // m) * m


def _choose_tn(V, H_pad, requested_tn, vmem_budget_bytes=40 * 1024 * 1024):
    """Pick the vocab tile width.

    Multiple of 128; the double-buffered bf16 w2 tile must fit the (v7x-safe)
    VMEM budget; and when the vocab is wide enough we keep >= 2 tiles so the
    "parallel" vocab axis can be split across both v7x TensorCores.
    """
    V128 = _round_up(V, 128)
    tn = min(_round_up(requested_tn, 128), V128)
    while tn > 128 and 2 * H_pad * tn * 2 > vmem_budget_bytes:
        tn -= 128
    if V128 >= 256 and _round_up(V, tn) // tn < 2:
        tn = _round_up(V128 // 2, 128)
    return tn


def prepack_params(embedding, w1, b1, w2, b2, *, tn=512):
    """One-time weight prepack — call ONCE, outside the per-token forward path.

    embedding: (V, E) f32 (kept f32; rows are gathered then cast per call)
    w1: (E, H), b1: (H,) or (1, H); w2: (H, V), b2: (V,) or (1, V)
    (w1/w2 pre-transposed relative to nn.Linear's (out, in) layout).

    Returns a dict of device arrays:
      w1_p     (E_pad, H_pad) bf16
      b1_p     (1, H_pad)     f32
      w2_tiles (V_pad//tn, H_pad, tn) bf16 — contiguous per-vocab-tile slabs
      b2_p     (1, V_pad)     f32
    """
    V, E = embedding.shape
    H = w1.shape[1]
    E_pad = _round_up(E, 128)
    H_pad = _round_up(H, 128)
    tn = _choose_tn(V, H_pad, tn)
    V_pad = _round_up(V, tn)
    nt = V_pad // tn

    w1_p = jnp.zeros((E_pad, H_pad), jnp.bfloat16).at[:E, :H].set(
        jnp.asarray(w1, jnp.float32).astype(jnp.bfloat16))
    b1_p = jnp.zeros((1, H_pad), jnp.float32).at[:, :H].set(
        jnp.asarray(b1, jnp.float32).reshape(1, H))

    w2_pad = jnp.zeros((H_pad, V_pad), jnp.bfloat16).at[:H, :V].set(
        jnp.asarray(w2, jnp.float32).astype(jnp.bfloat16))
    # (H_pad, V_pad) -> (nt, H_pad, tn): each vocab tile is one contiguous slab.
    w2_tiles = w2_pad.reshape(H_pad, nt, tn).transpose(1, 0, 2)

    b2_p = jnp.zeros((1, V_pad), jnp.float32).at[:, :V].set(
        jnp.asarray(b2, jnp.float32).reshape(1, V))

    return {
        "embedding": jnp.asarray(embedding, jnp.float32),
        "w1_p": w1_p,
        "b1_p": b1_p,
        "w2_tiles": w2_tiles,
        "b2_p": b2_p,
    }


def _fc1_kernel(ctx_ref, w1_ref, b1_ref, h_ref):
    # fc1 + relu, computed once per forward (hoisted out of the vocab loop).
    h = jnp.dot(ctx_ref[...], w1_ref[...],
                preferred_element_type=jnp.float32)        # (Bp, Hp) f32 acc
    h = jnp.maximum(h + b1_ref[...], 0.0)                  # bias + relu (VPU)
    h_ref[...] = h.astype(h_ref.dtype)                     # bf16 for fc2 MXU


def _fc2_kernel(h_ref, w2_ref, b2_ref, out_ref):
    # fc2 on one vocab tile: bf16 h (resident) x bf16 streamed w2 tile.
    logits = jnp.dot(h_ref[...], w2_ref[...],
                     preferred_element_type=jnp.float32)   # (Bp, TN) f32 acc
    out_ref[...] = (logits + b2_ref[...]).astype(out_ref.dtype)


def simple_llm_forward(input_ids, packed):
    """input_ids: (B, S) int32; packed: output of prepack_params.
    Returns next-token logits (B, V) float32."""
    embedding = packed["embedding"]
    w1_p, b1_p = packed["w1_p"], packed["b1_p"]
    w2_tiles, b2_p = packed["w2_tiles"], packed["b2_p"]

    B = input_ids.shape[0]
    V, E = embedding.shape
    E_pad, H_pad = w1_p.shape
    nt, _, tn = w2_tiles.shape
    V_pad = b2_p.shape[1]
    B_pad = _round_up(max(B, 8), 8)

    # Glue: gather the B last-token rows first, THEN cast (never touches the
    # rest of the embedding table).
    ctx = jnp.take(embedding, input_ids[:, -1], axis=0).astype(jnp.bfloat16)
    ctx_p = jnp.zeros((B_pad, E_pad), jnp.bfloat16).at[:B, :E].set(ctx)

    # ---- Stage 1: fc1 GEMV + relu (tiny, runs once; everything in VMEM). ----
    h = pl.pallas_call(
        _fc1_kernel,
        out_shape=jax.ShapeDtypeStruct((B_pad, H_pad), jnp.bfloat16),
        grid=(1,),
        in_specs=[
            pl.BlockSpec((B_pad, E_pad), lambda i: (0, 0)),
            pl.BlockSpec((E_pad, H_pad), lambda i: (0, 0)),
            pl.BlockSpec((1, H_pad), lambda i: (0, 0)),
        ],
        out_specs=pl.BlockSpec((B_pad, H_pad), lambda i: (0, 0)),
        compiler_params=pltpu.CompilerParams(
            dimension_semantics=("arbitrary",)),
    )(ctx_p, w1_p, b1_p)

    # ---- Stage 2: fc2 streamed over contiguous w2 vocab tiles. -------------
    # VMEM footprint of the streamed kernel (double-buffered w2/b2/out tiles
    # plus the small resident h); capped well under v7x's 64 MiB per-TC VMEM.
    w2_tile_bytes = H_pad * tn * 2
    vmem_needed = (2 * w2_tile_bytes          # double-buffered w2 tile
                   + 2 * tn * 4               # b2 tile buffers
                   + 2 * B_pad * tn * 4       # out tile buffers
                   + 2 * B_pad * H_pad * 2    # resident h
                   + (2 << 20))               # headroom
    vmem_limit = int(min(max(vmem_needed, 32 << 20), 48 << 20))
    # NOTE: pipeline_mode=pl.Buffered(1) on the resident h block would shave a
    # second (tiny) buffer; skipped — negligible after the fc1 hoist.

    out = pl.pallas_call(
        _fc2_kernel,
        out_shape=jax.ShapeDtypeStruct((B_pad, V_pad), jnp.float32),
        grid=(nt,),
        in_specs=[
            # h: constant index_map -> stays resident in VMEM across tiles.
            pl.BlockSpec((B_pad, H_pad), lambda j: (0, 0)),
            # w2 tile: one contiguous (H_pad, tn) slab per grid step
            # (leading tile dim squeezed away).
            pl.BlockSpec((None, H_pad, tn), lambda j: (j, 0, 0)),
            pl.BlockSpec((1, tn), lambda j: (0, j)),
        ],
        out_specs=pl.BlockSpec((B_pad, tn), lambda j: (0, j)),
        compiler_params=pltpu.CompilerParams(
            dimension_semantics=("parallel",),   # v7x: both TCs stream disjoint tiles
            vmem_limit_bytes=vmem_limit,
        ),
        cost_estimate=pl.CostEstimate(
            flops=2 * B_pad * H_pad * V_pad,
            transcendentals=0,
            bytes_accessed=(H_pad * V_pad * 2      # streamed bf16 w2
                            + V_pad * 4            # b2
                            + B_pad * H_pad * 2    # h
                            + B_pad * V_pad * 4),  # logits out
        ),
    )(h, w2_tiles, b2_p)

    return out[:B, :V]


def init_params(key, vocab_size, embedding_dim, hidden_dim):
    k_emb, k_w1, k_b1, k_w2, k_b2 = jax.random.split(key, 5)
    # nn.Embedding default init: N(0, 1)
    embedding = jax.random.normal(k_emb, (vocab_size, embedding_dim), jnp.float32)
    # nn.Linear default init: U(-1/sqrt(fan_in), 1/sqrt(fan_in)); W stored transposed.
    lim1 = 1.0 / (embedding_dim ** 0.5)
    w1 = jax.random.uniform(k_w1, (embedding_dim, hidden_dim), jnp.float32,
                            minval=-lim1, maxval=lim1)
    b1 = jax.random.uniform(k_b1, (1, hidden_dim), jnp.float32,
                            minval=-lim1, maxval=lim1)
    lim2 = 1.0 / (hidden_dim ** 0.5)
    w2 = jax.random.uniform(k_w2, (hidden_dim, vocab_size), jnp.float32,
                            minval=-lim2, maxval=lim2)
    b2 = jax.random.uniform(k_b2, (1, vocab_size), jnp.float32,
                            minval=-lim2, maxval=lim2)
    return embedding, w1, b1, w2, b2


if __name__ == "__main__":
    vocab_size, embedding_dim, hidden_dim = 256, 32, 64
    batch, seq_len = 2, 8

    key = jax.random.PRNGKey(0)
    k_params, k_ids = jax.random.split(key)
    embedding, w1, b1, w2, b2 = init_params(
        k_params, vocab_size, embedding_dim, hidden_dim)

    input_ids = jax.random.randint(
        k_ids, (batch, seq_len), 0, vocab_size, dtype=jnp.int32)

    # One-time weight prepack — NOT in the per-call forward path.
    packed = jax.block_until_ready(
        prepack_params(embedding, w1, b1, w2, b2, tn=512))

    forward = jax.jit(simple_llm_forward)
    logits = jax.block_until_ready(forward(input_ids, packed))

    # Pure-JAX reference mirroring the kernel's bf16-weight / f32-accumulate math.
    ctx_bf = jnp.take(embedding, input_ids[:, -1], axis=0).astype(jnp.bfloat16)
    h_ref = jnp.maximum(
        jnp.dot(ctx_bf, w1.astype(jnp.bfloat16),
                preferred_element_type=jnp.float32) + b1, 0.0)
    ref = jnp.dot(h_ref.astype(jnp.bfloat16), w2.astype(jnp.bfloat16),
                  preferred_element_type=jnp.float32) + b2

    assert logits.shape == (batch, vocab_size)
    assert jnp.allclose(logits, ref, atol=1e-3, rtol=1e-3)

    # Sanity: close to the full-f32 PyTorch-equivalent math within bf16 precision.
    ctx_f32 = jnp.take(embedding, input_ids[:, -1], axis=0)
    ref_f32 = jnp.maximum(ctx_f32 @ w1 + b1, 0.0) @ w2 + b2
    assert jnp.allclose(logits, ref_f32, atol=5e-2, rtol=5e-2)

    print("KERNEL_OK")
</pallas_src>

<mosaic_0001>
module attributes {stable_mosaic.version = 11 : i64} {
  func.func @_fc1_kernel(%arg0: i32, %arg1: memref<8x128xbf16, #tpu.memory_space<vmem>>, %arg2: memref<128x128xbf16, #tpu.memory_space<vmem>>, %arg3: memref<1x128xf32, #tpu.memory_space<vmem>>, %arg4: memref<8x128xbf16, #tpu.memory_space<vmem>>) attributes {dimension_semantics = [#tpu.dimension_semantics<arbitrary>], iteration_bounds = array<i64: 1>, scalar_prefetch = 0 : i64, scratch_operands = 0 : i64, tpu.core_type = #tpu.core_type<tc>, window_params = [{pipeline_mode = #tpu.pipeline_mode<synchronous>, transform_indices = @transform_0, window_bounds = array<i64: 8, 128>}, {pipeline_mode = #tpu.pipeline_mode<synchronous>, transform_indices = @transform_1, window_bounds = array<i64: 128, 128>}, {pipeline_mode = #tpu.pipeline_mode<synchronous>, transform_indices = @transform_2, window_bounds = array<i64: 1, 128>}, {pipeline_mode = #tpu.pipeline_mode<synchronous>, transform_indices = @transform_3, window_bounds = array<i64: 8, 128>}]} {
    %c0 = arith.constant 0 : index
    %c0_0 = arith.constant 0 : index
    %0 = vector.load %arg1[%c0, %c0_0] : memref<8x128xbf16, #tpu.memory_space<vmem>>, vector<8x128xbf16>
    %c0_1 = arith.constant 0 : index
    %c0_2 = arith.constant 0 : index
    %1 = vector.load %arg2[%c0_1, %c0_2] : memref<128x128xbf16, #tpu.memory_space<vmem>>, vector<128x128xbf16>
    %cst = arith.constant dense<0.000000e+00> : vector<8x128xf32>
    %2 = tpu.matmul %0, %1, %cst {dimension_numbers = #tpu.dot_dimension_numbers<[1], [0], [0], [1], [0, 0, 1, 1], [], []>} : vector<8x128xbf16>, vector<128x128xbf16>, vector<8x128xf32> -> vector<8x128xf32>
    %c0_3 = arith.constant 0 : index
    %c0_4 = arith.constant 0 : index
    %3 = vector.load %arg3[%c0_3, %c0_4] : memref<1x128xf32, #tpu.memory_space<vmem>>, vector<1x128xf32>
    %4 = vector.broadcast %3 : vector<1x128xf32> to vector<8x128xf32>
    %5 = arith.addf %2, %4 : vector<8x128xf32>
    %cst_5 = arith.constant 0.000000e+00 : f32
    %6 = vector.broadcast %cst_5 : f32 to vector<8x128xf32>
    %7 = arith.maximumf %5, %6 : vector<8x128xf32>
    %8 = arith.truncf %7 : vector<8x128xf32> to vector<8x128xbf16>
    %c0_6 = arith.constant 0 : index
    %c0_7 = arith.constant 0 : index
    %9 = vector.load %arg4[%c0_6, %c0_7] : memref<8x128xbf16, #tpu.memory_space<vmem>>, vector<8x128xbf16>
    tpu.vector_store %arg4[%c0_6, %c0_7], %8 {strides = array<i32>} : memref<8x128xbf16, #tpu.memory_space<vmem>>, vector<8x128xbf16>,
    return
  }
  func.func @transform_0(%arg0: i32) -> (i32, i32) {
    %c0_i32 = arith.constant 0 : i32
    %c0_i32_0 = arith.constant 0 : i32
    %c0_i32_1 = arith.constant 0 : i32
    return %c0_i32, %c0_i32_0 : i32, i32
  }
  func.func @transform_1(%arg0: i32) -> (i32, i32) {
    %c0_i32 = arith.constant 0 : i32
    %c0_i32_0 = arith.constant 0 : i32
    %c0_i32_1 = arith.constant 0 : i32
    return %c0_i32, %c0_i32_0 : i32, i32
  }
  func.func @transform_2(%arg0: i32) -> (i32, i32) {
    %c0_i32 = arith.constant 0 : i32
    %c0_i32_0 = arith.constant 0 : i32
    %c0_i32_1 = arith.constant 0 : i32
    return %c0_i32, %c0_i32_0 : i32, i32
  }
  func.func @transform_3(%arg0: i32) -> (i32, i32) {
    %c0_i32 = arith.constant 0 : i32
    %c0_i32_0 = arith.constant 0 : i32
    %c0_i32_1 = arith.constant 0 : i32
    return %c0_i32, %c0_i32_0 : i32, i32
  }
}

module attributes {stable_mosaic.version = 11 : i64} {
  func.func @_fc2_kernel(%arg0: i32, %arg1: memref<8x128xbf16, #tpu.memory_space<vmem>>, %arg2: memref<1x128x128xbf16, #tpu.memory_space<vmem>>, %arg3: memref<1x128xf32, #tpu.memory_space<vmem>>, %arg4: memref<8x128xf32, #tpu.memory_space<vmem>>) attributes {dimension_semantics = [#tpu.dimension_semantics<parallel>], iteration_bounds = array<i64: 2>, scalar_prefetch = 0 : i64, scratch_operands = 0 : i64, tpu.core_type = #tpu.core_type<tc>, window_params = [{pipeline_mode = #tpu.pipeline_mode<synchronous>, transform_indices = @transform_0, window_bounds = array<i64: 8, 128>}, {transform_indices = @transform_1, window_bounds = array<i64: 1, 128, 128>}, {transform_indices = @transform_2, window_bounds = array<i64: 1, 128>}, {transform_indices = @transform_3, window_bounds = array<i64: 8, 128>}]} {
    %c0 = arith.constant 0 : index
    %c0_0 = arith.constant 0 : index
    %0 = vector.load %arg1[%c0, %c0_0] : memref<8x128xbf16, #tpu.memory_space<vmem>>, vector<8x128xbf16>
    %c0_1 = arith.constant 0 : index
    %c0_2 = arith.constant 0 : index
    %c0_3 = arith.constant 0 : index
    %1 = vector.load %arg2[%c0_1, %c0_2, %c0_3] : memref<1x128x128xbf16, #tpu.memory_space<vmem>>, vector<1x128x128xbf16>
    %2 = vector.shape_cast %1 : vector<1x128x128xbf16> to vector<128x128xbf16>
    %cst = arith.constant dense<0.000000e+00> : vector<8x128xf32>
    %3 = tpu.matmul %0, %2, %cst {dimension_numbers = #tpu.dot_dimension_numbers<[1], [0], [0], [1], [0, 0, 1, 1], [], []>} : vector<8x128xbf16>, vector<128x128xbf16>, vector<8x128xf32> -> vector<8x128xf32>
    %c0_4 = arith.constant 0 : index
    %c0_5 = arith.constant 0 : index
    %4 = vector.load %arg3[%c0_4, %c0_5] : memref<1x128xf32, #tpu.memory_space<vmem>>, vector<1x128xf32>
    %5 = vector.broadcast %4 : vector<1x128xf32> to vector<8x128xf32>
    %6 = arith.addf %3, %5 : vector<8x128xf32>
    %c0_6 = arith.constant 0 : index
    %c0_7 = arith.constant 0 : index
    %7 = vector.load %arg4[%c0_6, %c0_7] : memref<8x128xf32, #tpu.memory_space<vmem>>, vector<8x128xf32>
    tpu.vector_store %arg4[%c0_6, %c0_7], %6 {strides = array<i32>} : memref<8x128xf32, #tpu.memory_space<vmem>>, vector<8x128xf32>,
    return
  }
  func.func @transform_0(%arg0: i32) -> (i32, i32) {
    %c0_i32 = arith.constant 0 : i32
    %c0_i32_0 = arith.constant 0 : i32
    %c0_i32_1 = arith.constant 0 : i32
    return %c0_i32, %c0_i32_0 : i32, i32
  }
  func.func @transform_1(%arg0: i32) -> (i32, i32, i32) {
    %c0_i32 = arith.constant 0 : i32
    %c0_i32_0 = arith.constant 0 : i32
    %c0_i32_1 = arith.constant 0 : i32
    return %arg0, %c0_i32, %c0_i32_0 : i32, i32, i32
  }
  func.func @transform_2(%arg0: i32) -> (i32, i32) {
    %c0_i32 = arith.constant 0 : i32
    %c0_i32_0 = arith.constant 0 : i32
    return %c0_i32, %arg0 : i32, i32
  }
  func.func @transform_3(%arg0: i32) -> (i32, i32) {
    %c0_i32 = arith.constant 0 : i32
    %c0_i32_0 = arith.constant 0 : i32
    return %c0_i32, %arg0 : i32, i32
  }
}

</mosaic_0001>

<llo_original>
// kernel: simple_llm_forward.3
$region0: #{simple_llm_forward.3}
  #allocation0 [shape = 'u32[]', space=smem, size = 0x4, offset = 0x4, fixed_abs, tag = 'smem constant byte address 0x4 - core index']
  #allocation1 [shape = 'u32[144,128]{1,0:T(1,128)}', space=vmem, size = 0x12000, scoped, tag = 'internal scratch']
  %s0 = inlined_call_operand.vmem [shape: bf16[8,128], index: 0, kind: input, shape index: {}]
  %s1 = inlined_call_operand.vmem [shape: bf16[2,128,128], index: 1, kind: input, shape index: {}]
  %s2 = inlined_call_operand.vmem [shape: f32[1,256], index: 2, kind: input, shape index: {}]
  %s3 = inlined_call_operand.vmem [shape: f32[8,256], index: 3, kind: output, shape index: {}]
  %s4 = sld [smem:[#allocation0]]
  $region45: #{simple_llm_forward.3} parent=0
    _
  %s6 = ssub.s32 1, %s4
  %s7 = scalar_select 0, %s6, %s4
  loop: start=0, step=1, limit=4
  $region2: #{simple_llm_forward.3} parent=0 // loop_pre_header
    _
  $region3: #{simple_llm_forward.3} parent=0 // loop_header
    %s9 = sphi 0, %s13
    %p10 = scmp.ge.s32.totalorder %s9, 4
    %s17 = sphi 0, %s17
    %s19 = sphi 0, %s17
    %s20 = sphi 0, %s19
    %s34 = sphi 0, %s20
    %s40 = sphi 0, %s42
    %s43 = sphi 0, %s40
    %s44 = sphi 0, %s43
    %s60 = sphi 0, %s44
    %s66 = sphi 0, %s68
    %s69 = sphi 0, %s66
    %s70 = sphi 0, %s69
    %s86 = sphi 0, %s70
    %s92 = sphi 0, %s94
    %s95 = sphi 0, %s92
    %s96 = sphi 0, %s95
    %s112 = sphi 0, %s96
  $region4: #{simple_llm_forward.3} parent=0 // loop_header_branch
    %12 = sbr.rel (%p10) target = $region8
  $region5: #{simple_llm_forward.3} parent=0 // loop_body
    %s14 = ssub.s32 %s9, 1
    %s15 = ssub.s32 %s9, 2
    %s16 = sadd.s32 %s9, 1
    %s18 = sadd.s32 %s17, 1
    %p21 = scmp.eq.s32.totalorder %s9, 1
    %p22 = scmp.ne.s32.totalorder %s17, %s19
    %p23 = scmp.eq.s32.totalorder %s9, 0
    %p24 = por %p22, %p23
    %p25 = scmp.ne.s32.totalorder %s17, %s19
    %p26 = scmp.eq.s32.totalorder %s14, 1
    %p27 = por %p25, %p26
    %p28 = scmp.ne.s32.totalorder %s19, %s20
    %p29 = scmp.eq.s32.totalorder %s14, 0
    %p30 = por %p28, %p29
    %p31 = scmp.ne.s32.totalorder %s19, %s20
    %p32 = scmp.eq.s32.totalorder %s15, 1
    %p33 = por %p31, %p32
    %p35 = scmp.ne.s32.totalorder %s20, %s34
    %p36 = scmp.eq.s32.totalorder %s15, 0
    %p37 = por %p35, %p36
    %s38 = ssub.s32 %s9, %s16
    %p39 = scmp.eq.s32.totalorder %s38, 0
    %s41 = sadd.s32 %s40, 1
    %s42 = scalar_select %p39, %s40, %s41
    %p45 = pneg %p39
    %p46 = scmp.eq.s32.totalorder %s9, 1
    %p47 = por %p45, %p46
    %p48 = scmp.ne.s32.totalorder %s40, %s43
    %p49 = scmp.eq.s32.totalorder %s9, 0
    %p50 = por %p48, %p49
    %p51 = scmp.ne.s32.totalorder %s40, %s43
    %p52 = scmp.eq.s32.totalorder %s14, 1
    %p53 = por %p51, %p52
    %p54 = scmp.ne.s32.totalorder %s43, %s44
    %p55 = scmp.eq.s32.totalorder %s14, 0
    %p56 = por %p54, %p55
    %p57 = scmp.ne.s32.totalorder %s43, %s44
    %p58 = scmp.eq.s32.totalorder %s15, 1
    %p59 = por %p57, %p58
    %p61 = scmp.ne.s32.totalorder %s44, %s60
    %p62 = scmp.eq.s32.totalorder %s15, 0
    %p63 = por %p61, %p62
    %s64 = ssub.s32 %s9, %s16
    %p65 = scmp.eq.s32.totalorder %s64, 0
    %s67 = sadd.s32 %s66, 1
    %s68 = scalar_select %p65, %s66, %s67
    %p71 = pneg %p65
    %p72 = scmp.eq.s32.totalorder %s9, 1
    %p73 = por %p71, %p72
    %p74 = scmp.ne.s32.totalorder %s66, %s69
    %p75 = scmp.eq.s32.totalorder %s9, 0
    %p76 = por %p74, %p75
    %p77 = scmp.ne.s32.totalorder %s66, %s69
    %p78 = scmp.eq.s32.totalorder %s14, 1
    %p79 = por %p77, %p78
    %p80 = scmp.ne.s32.totalorder %s69, %s70
    %p81 = scmp.eq.s32.totalorder %s14, 0
    %p82 = por %p80, %p81
    %p83 = scmp.ne.s32.totalorder %s69, %s70
    %p84 = scmp.eq.s32.totalorder %s15, 1
    %p85 = por %p83, %p84
    %p87 = scmp.ne.s32.totalorder %s70, %s86
    %p88 = scmp.eq.s32.totalorder %s15, 0
    %p89 = por %p87, %p88
    %s90 = ssub.s32 %s9, %s16
    %p91 = scmp.eq.s32.totalorder %s90, 0
    %s93 = sadd.s32 %s92, 1
    %s94 = scalar_select %p91, %s92, %s93
    %p97 = pneg %p91
    %p98 = scmp.eq.s32.totalorder %s9, 1
    %p99 = por %p97, %p98
    %p100 = scmp.ne.s32.totalorder %s92, %s95
    %p101 = scmp.eq.s32.totalorder %s9, 0
    %p102 = por %p100, %p101
    %p103 = scmp.ne.s32.totalorder %s92, %s95
    %p104 = scmp.eq.s32.totalorder %s14, 1
    %p105 = por %p103, %p104
    %p106 = scmp.ne.s32.totalorder %s95, %s96
    %p107 = scmp.eq.s32.totalorder %s14, 0
    %p108 = por %p106, %p107
    %p109 = scmp.ne.s32.totalorder %s95, %s96
    %p110 = scmp.eq.s32.totalorder %s15, 1
    %p111 = por %p109, %p110
    %p113 = scmp.ne.s32.totalorder %s96, %s112
    %p114 = scmp.eq.s32.totalorder %s15, 0
    %p115 = por %p113, %p114
    %p116 = scmp.le.s32.totalorder 1, %s9
    %p117 = scmp.lt.s32.totalorder %s9, 3
    %p118 = pnand %p116, %p117
    %p119 = pneg %p118
    // Predicated region
    $region9: #{simple_llm_forward.3} parent=5 // pred_check
      _
    $region10: #{simple_llm_forward.3} parent=5 // pred_check_branch
      %121 = sbr.rel (%p118) target = $region12
    $region11: #{simple_llm_forward.3} parent=5 // pred_region
      %s122 = ssub.s32 %s9, 1
      // Predicated region
      $region13: #{simple_llm_forward.3} parent=11 // pred_check
        %p123 = pneg %p30
      $region14: #{simple_llm_forward.3} parent=11 // pred_check_branch
        %125 = sbr.rel (%p123) target = $region16
      $region15: #{simple_llm_forward.3} parent=11 // pred_region
        _
      $region16: #{simple_llm_forward.3} parent=11 // pred_fallthru
        _
    $region12: #{simple_llm_forward.3} parent=5 // pred_fallthru
      _
    %p126 = scmp.lt.s32.totalorder %s9, 2
    // Predicated region
    $region17: #{simple_llm_forward.3} parent=5 // pred_check
      %p127 = pneg %p126
    $region18: #{simple_llm_forward.3} parent=5 // pred_check_branch
      %129 = sbr.rel (%p127) target = $region20
    $region19: #{simple_llm_forward.3} parent=5 // pred_region
      // Predicated region
      $region21: #{simple_llm_forward.3} parent=19 // pred_check
        %p130 = pneg %p50
      $region22: #{simple_llm_forward.3} parent=19 // pred_check_branch
        %132 = sbr.rel (%p130) target = $region24
      $region23: #{simple_llm_forward.3} parent=19 // pred_region
        %p133 = scmp.lt.s32.totalorder %s9, 1
        %s134 = scalar_select %p133, %s9, 1
        %s135 = smul.addr %s134, 16
        %s136 = smul.addr %s135, 4
        %s137 = scalar_lea.vmem %s1, %s136
      $region24: #{simple_llm_forward.3} parent=19 // pred_fallthru
        _
      // Predicated region
      $region25: #{simple_llm_forward.3} parent=19 // pred_check
        %p138 = pneg %p76
      $region26: #{simple_llm_forward.3} parent=19 // pred_check_branch
        %140 = sbr.rel (%p138) target = $region28
      $region27: #{simple_llm_forward.3} parent=19 // pred_region
        %p141 = scmp.lt.s32.totalorder %s9, 1
        %s142 = scalar_select %p141, %s9, 1
        %s143 = scalar_lea.vmem %s2, %s142
      $region28: #{simple_llm_forward.3} parent=19 // pred_fallthru
        _
    $region20: #{simple_llm_forward.3} parent=5 // pred_fallthru
      _
    %p144 = scmp.le.s32.totalorder 1, %s9
    %p145 = scmp.lt.s32.totalorder %s9, 3
    %p146 = pnand %p144, %p145
    %p147 = pneg %p146
    // Predicated region
    $region29: #{simple_llm_forward.3} parent=5 // pred_check
      _
    $region30: #{simple_llm_forward.3} parent=5 // pred_check_branch
      %149 = sbr.rel (%p146) target = $region32
    $region31: #{simple_llm_forward.3} parent=5 // pred_region
      %s150 = ssub.s32 %s9, 1
      %p151 = pneg %p30
      %p152 = pneg %p27
      %p153 = scmp.lt.s32.totalorder %s14, 1
      %s154 = scalar_select %p153, %s14, 1
      %s155 = smul.addr %s154, 16
      %s156 = smul.addr %s155, 4
      %s157 = scalar_lea.vmem %s1, %s156
      %p158 = pneg %p56
      %p159 = pneg %p53
      %p160 = scmp.lt.s32.totalorder %s14, 1
      %s161 = scalar_select %p160, %s14, 1
      %s162 = scalar_lea.vmem %s2, %s161
      %p163 = pneg %p82
      %p164 = pneg %p79
      %p165 = pneg %p108
      %p166 = pneg %p105
      %p167 = scmp.lt.s32.totalorder %s14, 1
      %s168 = scalar_select %p167, %s14, 1
      %s169 = smul.addr %s168, 8
      %s170 = scalar_lea.vmem %s3, %s169
      %p171 = scmp.lt.s32.totalorder %s14, 1
      %s172 = scalar_select %p171, %s14, 1
      %s173 = smul.addr %s172, 16
      %s174 = smul.addr %s173, 4
      %s175 = scalar_lea.vmem %s1, %s174
      %p176 = scmp.lt.s32.totalorder %s14, 1
      %s177 = scalar_select %p176, %s14, 1
      %s178 = scalar_lea.vmem %s2, %s177
      %p179 = scmp.lt.s32.totalorder %s14, 1
      %s180 = scalar_select %p179, %s14, 1
      %s181 = smul.addr %s180, 8
      %s182 = scalar_lea.vmem %s3, %s181
      %v184 = vld [vmem:[%s0] sm:$0xf]
      %v185 = vld [vmem:[%s175] sm:$0xf]
      %v186 = vld [vmem:[%s175 + $0x4] sm:$0xf]
      %v187 = vld [vmem:[%s175 + $0x8] sm:$0xf]
      %v188 = vld [vmem:[%s175 + $0xc] sm:$0xf]
      %v189 = vld [vmem:[%s175 + $0x10] sm:$0xf]
      %v190 = vld [vmem:[%s175 + $0x14] sm:$0xf]
      %v191 = vld [vmem:[%s175 + $0x18] sm:$0xf]
      %v192 = vld [vmem:[%s175 + $0x1c] sm:$0xf]
      %v193 = vld [vmem:[%s175 + $0x20] sm:$0xf]
      %v194 = vld [vmem:[%s175 + $0x24] sm:$0xf]
      %v195 = vld [vmem:[%s175 + $0x28] sm:$0xf]
      %v196 = vld [vmem:[%s175 + $0x2c] sm:$0xf]
      %v197 = vld [vmem:[%s175 + $0x30] sm:$0xf]
      %v198 = vld [vmem:[%s175 + $0x34] sm:$0xf]
      %v199 = vld [vmem:[%s175 + $0x38] sm:$0xf]
      %v200 = vld [vmem:[%s175 + $0x3c] sm:$0xf]
      %v201 = vld [vmem:[%s178] sm:$0x1]
      %v203 = vlaneseq
      %v204 = vshrl.u32 %v203, 7
      %v205 = vsub.s32 0, %v204
      %v206 = vrot.slane %v201, %v205
      %v224 = vunpack.c.l.b16 %v185
      %v225 = vunpack.c.l.b16 %v186
      %v226 = vunpack.c.l.b16 %v187
      %v227 = vunpack.c.l.b16 %v188
      %v228 = vunpack.c.l.b16 %v189
      %v229 = vunpack.c.l.b16 %v190
      %v230 = vunpack.c.l.b16 %v191
      %v231 = vunpack.c.l.b16 %v192
      %v232 = vunpack.c.l.b16 %v193
      %v233 = vunpack.c.l.b16 %v194
      %v234 = vunpack.c.l.b16 %v195
      %v235 = vunpack.c.l.b16 %v196
      %v236 = vunpack.c.l.b16 %v197
      %v237 = vunpack.c.l.b16 %v198
      %v238 = vunpack.c.l.b16 %v199
      %v239 = vunpack.c.l.b16 %v200
      %v240 = vpack.c.b16 %v225, %v224
      %v241 = vpack.c.b16 %v227, %v226
      %v242 = vpack.c.b16 %v229, %v228
      %v243 = vpack.c.b16 %v231, %v230
      %v244 = vpack.c.b16 %v233, %v232
      %v245 = vpack.c.b16 %v235, %v234
      %v246 = vpack.c.b16 %v237, %v236
      %v247 = vpack.c.b16 %v239, %v238
      %256 = vmatprep.subr.bf16.mxu0 0
      %257 = vmatpush1.bf16.msra.mxu0 %v247
      %258 = vmatprep.subr.bf16.mxu0 0
      %259 = vmatpush1.bf16.msra.mxu0 %v246
      %260 = vmatprep.subr.bf16.mxu0 0
      %261 = vmatpush1.bf16.msra.mxu0 %v245
      %262 = vmatprep.subr.bf16.mxu0 0
      %263 = vmatpush1.bf16.msra.mxu0 %v244
      %264 = vmatprep.subr.bf16.mxu0 0
      %265 = vmatpush1.bf16.msra.mxu0 %v243
      %266 = vmatprep.subr.bf16.mxu0 0
      %267 = vmatpush1.bf16.msra.mxu0 %v242
      %268 = vmatprep.subr.bf16.mxu0 0
      %269 = vmatpush1.bf16.msra.mxu0 %v241
      %270 = vmatprep.subr.bf16.mxu0 0
      %271 = vmatpush1.bf16.msra.mxu0 %v240
      %272 = vmatprep.subr.bf16.mxu0 0
      %273 = vmatpush2.bf16.msra.mxu0 0
      %274 = vmatprep.subr.bf16.mxu0 0
      %275 = vmatpush2.bf16.msra.mxu0 0
      %276 = vmatprep.subr.bf16.mxu0 0
      %277 = vmatpush2.bf16.msra.mxu0 0
      %278 = vmatprep.subr.bf16.mxu0 0
      %279 = vmatpush2.bf16.msra.mxu0 0
      %280 = vmatprep.subr.bf16.mxu0 0
      %281 = vmatpush2.bf16.msra.mxu0 0
      %282 = vmatprep.subr.bf16.mxu0 0
      %283 = vmatpush2.bf16.msra.mxu0 0
      %284 = vmatprep.subr.bf16.mxu0 0
      %285 = vmatpush2.bf16.msra.mxu0 0
      %286 = vmatprep.subr.bf16.mxu0 0
      %287 = vmatpush2.bf16.msra.mxu0 0
      %288 = vmatprep.mubr.bf16.mxu0 0
      %289 = vmatmul.mubr.bf16.gmra.mxu0 %v184
      %v290 = vpop.f32.mrf.mxu0
      %v291 = vadd.f32 %v206, %v290
      %v292 = vpop.f32.mrf.mxu0
      %v293 = vpop.f32.mrf.mxu0
      %v294 = vpop.f32.mrf.mxu0
      %295 = vdwg.mxu0
      %296 = vst [vmem:[%s182] sm:$0xff] %v291
      %p297 = scmp.lt.s32.totalorder %s14, 1
      %s298 = scalar_select %p297, %s14, 1
      %s299 = smul.addr %s298, 8
      %s300 = scalar_lea.vmem %s3, %s299
      // Predicated region
      $region33: #{simple_llm_forward.3} parent=31 // pred_check
        %p301 = pneg %p105
      $region34: #{simple_llm_forward.3} parent=31 // pred_check_branch
        %303 = sbr.rel (%p301) target = $region36
      $region35: #{simple_llm_forward.3} parent=31 // pred_region
        _
      $region36: #{simple_llm_forward.3} parent=31 // pred_fallthru
        _
    $region32: #{simple_llm_forward.3} parent=5 // pred_fallthru
      _
    %p304 = scmp.le.s32.totalorder 2, %s9
    // Predicated region
    $region37: #{simple_llm_forward.3} parent=5 // pred_check
      %p305 = pneg %p304
    $region38: #{simple_llm_forward.3} parent=5 // pred_check_branch
      %307 = sbr.rel (%p305) target = $region40
    $region39: #{simple_llm_forward.3} parent=5 // pred_region
      %s308 = ssub.s32 %s9, 2
      // Predicated region
      $region41: #{simple_llm_forward.3} parent=39 // pred_check
        %p309 = pneg %p111
      $region42: #{simple_llm_forward.3} parent=39 // pred_check_branch
        %311 = sbr.rel (%p309) target = $region44
      $region43: #{simple_llm_forward.3} parent=39 // pred_region
        %p312 = scmp.lt.s32.totalorder %s15, 1
        %s313 = scalar_select %p312, %s15, 1
        %s314 = smul.addr %s313, 8
        %s315 = scalar_lea.vmem %s3, %s314
      $region44: #{simple_llm_forward.3} parent=39 // pred_fallthru
        _
    $region40: #{simple_llm_forward.3} parent=5 // pred_fallthru
      _
  $region6: #{simple_llm_forward.3} parent=0 // loop_footer
    %s13 = sadd.s32 1, %s9
  $region7: #{simple_llm_forward.3} parent=0 // loop_footer_branch
    %8 = sbr.rel target = $region3
  $region8: #{simple_llm_forward.3} parent=0 // loop_exit
    _

// kernel: simple_llm_forward.2
$region0: #{simple_llm_forward.2}
  #allocation0 [shape = 'u32[]', space=smem, size = 0x4, offset = 0x4, fixed_abs, tag = 'smem constant byte address 0x4 - core index']
  #allocation1 [shape = 'u32[144,128]{1,0:T(1,128)}', space=vmem, size = 0x12000, scoped, tag = 'internal scratch']
  %s0 = inlined_call_operand.vmem [shape: bf16[8,128], index: 0, kind: input, shape index: {}]
  %s1 = inlined_call_operand.vmem [shape: bf16[128,128], index: 1, kind: input, shape index: {}]
  %s2 = inlined_call_operand.vmem [shape: f32[1,128], index: 2, kind: input, shape index: {}]
  %s3 = inlined_call_operand.vmem [shape: bf16[8,128], index: 3, kind: output, shape index: {}]
  %s4 = sld [smem:[#allocation0]]
  $region22: #{simple_llm_forward.2} parent=0
    _
  %s6 = ssub.s32 1, %s4
  %s7 = scalar_select 0, %s6, %s4
  // Predicated region
  $region2: #{simple_llm_forward.2} parent=0 // pred_check
    _
  $region3: #{simple_llm_forward.2} parent=0 // pred_check_branch
    %9 = sbr.rel (0) target = $region5
  $region4: #{simple_llm_forward.2} parent=0 // pred_region
    _
  $region5: #{simple_llm_forward.2} parent=0 // pred_fallthru
    _
  // Predicated region
  $region6: #{simple_llm_forward.2} parent=0 // pred_check
    _
  $region7: #{simple_llm_forward.2} parent=0 // pred_check_branch
    %11 = sbr.rel (0) target = $region9
  $region8: #{simple_llm_forward.2} parent=0 // pred_region
    _
  $region9: #{simple_llm_forward.2} parent=0 // pred_fallthru
    _
  // Predicated region
  $region10: #{simple_llm_forward.2} parent=0 // pred_check
    _
  $region11: #{simple_llm_forward.2} parent=0 // pred_check_branch
    %13 = sbr.rel (0) target = $region13
  $region12: #{simple_llm_forward.2} parent=0 // pred_region
    _
  $region13: #{simple_llm_forward.2} parent=0 // pred_fallthru
    _
  %v15 = vld [vmem:[%s0] sm:$0xf]
  %v16 = vld [vmem:[%s1] sm:$0xf]
  %v17 = vld [vmem:[%s1 + $0x4] sm:$0xf]
  %v18 = vld [vmem:[%s1 + $0x8] sm:$0xf]
  %v19 = vld [vmem:[%s1 + $0xc] sm:$0xf]
  %v20 = vld [vmem:[%s1 + $0x10] sm:$0xf]
  %v21 = vld [vmem:[%s1 + $0x14] sm:$0xf]
  %v22 = vld [vmem:[%s1 + $0x18] sm:$0xf]
  %v23 = vld [vmem:[%s1 + $0x1c] sm:$0xf]
  %v24 = vld [vmem:[%s1 + $0x20] sm:$0xf]
  %v25 = vld [vmem:[%s1 + $0x24] sm:$0xf]
  %v26 = vld [vmem:[%s1 + $0x28] sm:$0xf]
  %v27 = vld [vmem:[%s1 + $0x2c] sm:$0xf]
  %v28 = vld [vmem:[%s1 + $0x30] sm:$0xf]
  %v29 = vld [vmem:[%s1 + $0x34] sm:$0xf]
  %v30 = vld [vmem:[%s1 + $0x38] sm:$0xf]
  %v31 = vld [vmem:[%s1 + $0x3c] sm:$0xf]
  %v32 = vld [vmem:[%s2] sm:$0x1]
  %v34 = vlaneseq
  %v35 = vshrl.u32 %v34, 7
  %v36 = vsub.s32 0, %v35
  %v37 = vrot.slane %v32, %v36
  %v55 = vunpack.c.l.b16 %v16
  %v56 = vunpack.c.l.b16 %v17
  %v57 = vunpack.c.l.b16 %v18
  %v58 = vunpack.c.l.b16 %v19
  %v59 = vunpack.c.l.b16 %v20
  %v60 = vunpack.c.l.b16 %v21
  %v61 = vunpack.c.l.b16 %v22
  %v62 = vunpack.c.l.b16 %v23
  %v63 = vunpack.c.l.b16 %v24
  %v64 = vunpack.c.l.b16 %v25
  %v65 = vunpack.c.l.b16 %v26
  %v66 = vunpack.c.l.b16 %v27
  %v67 = vunpack.c.l.b16 %v28
  %v68 = vunpack.c.l.b16 %v29
  %v69 = vunpack.c.l.b16 %v30
  %v70 = vunpack.c.l.b16 %v31
  %v71 = vpack.c.b16 %v56, %v55
  %v72 = vpack.c.b16 %v58, %v57
  %v73 = vpack.c.b16 %v60, %v59
  %v74 = vpack.c.b16 %v62, %v61
  %v75 = vpack.c.b16 %v64, %v63
  %v76 = vpack.c.b16 %v66, %v65
  %v77 = vpack.c.b16 %v68, %v67
  %v78 = vpack.c.b16 %v70, %v69
  %87 = vmatprep.subr.bf16.mxu0 0
  %88 = vmatpush1.bf16.msra.mxu0 %v78
  %89 = vmatprep.subr.bf16.mxu0 0
  %90 = vmatpush1.bf16.msra.mxu0 %v77
  %91 = vmatprep.subr.bf16.mxu0 0
  %92 = vmatpush1.bf16.msra.mxu0 %v76
  %93 = vmatprep.subr.bf16.mxu0 0
  %94 = vmatpush1.bf16.msra.mxu0 %v75
  %95 = vmatprep.subr.bf16.mxu0 0
  %96 = vmatpush1.bf16.msra.mxu0 %v74
  %97 = vmatprep.subr.bf16.mxu0 0
  %98 = vmatpush1.bf16.msra.mxu0 %v73
  %99 = vmatprep.subr.bf16.mxu0 0
  %100 = vmatpush1.bf16.msra.mxu0 %v72
  %101 = vmatprep.subr.bf16.mxu0 0
  %102 = vmatpush1.bf16.msra.mxu0 %v71
  %103 = vmatprep.subr.bf16.mxu0 0
  %104 = vmatpush2.bf16.msra.mxu0 0
  %105 = vmatprep.subr.bf16.mxu0 0
  %106 = vmatpush2.bf16.msra.mxu0 0
  %107 = vmatprep.subr.bf16.mxu0 0
  %108 = vmatpush2.bf16.msra.mxu0 0
  %109 = vmatprep.subr.bf16.mxu0 0
  %110 = vmatpush2.bf16.msra.mxu0 0
  %111 = vmatprep.subr.bf16.mxu0 0
  %112 = vmatpush2.bf16.msra.mxu0 0
  %113 = vmatprep.subr.bf16.mxu0 0
  %114 = vmatpush2.bf16.msra.mxu0 0
  %115 = vmatprep.subr.bf16.mxu0 0
  %116 = vmatpush2.bf16.msra.mxu0 0
  %117 = vmatprep.subr.bf16.mxu0 0
  %118 = vmatpush2.bf16.msra.mxu0 0
  %119 = vmatprep.mubr.bf16.mxu0 0
  %120 = vmatmul.mubr.bf16.gmra.mxu0 %v15
  %v121 = vpop.f32.mrf.mxu0
  %v122 = vadd.f32 %v37, %v121
  %v123 = vpop.f32.mrf.mxu0
  %v124 = vpop.f32.mrf.mxu0
  %v125 = vpop.f32.mrf.mxu0
  %126 = vdwg.mxu0
  %v127 = vmax.f32 %v122, 0.0
  %v128 = vpack.c.bf16 %v127, %v127
  %129 = vst [vmem:[%s3] sm:$0xf] %v128
  // Predicated region
  $region14: #{simple_llm_forward.2} parent=0 // pred_check
    _
  $region15: #{simple_llm_forward.2} parent=0 // pred_check_branch
    %131 = sbr.rel (0) target = $region17
  $region16: #{simple_llm_forward.2} parent=0 // pred_region
    _
  $region17: #{simple_llm_forward.2} parent=0 // pred_fallthru
    _
  // Predicated region
  $region18: #{simple_llm_forward.2} parent=0 // pred_check
    _
  $region19: #{simple_llm_forward.2} parent=0 // pred_check_branch
    %133 = sbr.rel (0) target = $region21
  $region20: #{simple_llm_forward.2} parent=0 // pred_region
    _
  $region21: #{simple_llm_forward.2} parent=0 // pred_fallthru
    _

</llo_original>
